<compile_context>
chip_gen: v7x
topology: tpu7x:2x2x1
jax: 0.10.0
libtpu: 0.0.40
codegen_flags: <defaults>
</compile_context>

<pallas_src>
import functools
import math

import jax
import jax.numpy as jnp
from jax import lax
from jax.experimental import pallas as pl
from jax.experimental.pallas import tpu as pltpu


# --------------------------------------------------------------------------
# helpers
# --------------------------------------------------------------------------
def _largest_divisor_tile(n, cap):
    """Largest tile <= cap that evenly divides n (keeps blocks exact)."""
    cap = min(n, cap)
    for t in range(cap, 0, -1):
        if n % t == 0:
            return t
    return n


def _clamp_vmem_limit(nbytes):
    """Explicit scoped-VMEM limit: >= default 32 MiB, < v7x's 64 MiB VMEM."""
    return int(min(56 << 20, max(32 << 20, int(nbytes) + (4 << 20))))


# --------------------------------------------------------------------------
# Kernel 1: fused QKV projection  (rows, E) @ (E, 3E) + (1, 3E)
# --------------------------------------------------------------------------
def _qkv_proj_kernel(x_ref, w_ref, b_ref, o_ref):
    acc = jnp.dot(x_ref[...], w_ref[...], preferred_element_type=jnp.float32)
    o_ref[...] = (acc + b_ref[...]).astype(o_ref.dtype)


def _qkv_projection(x2d, w_qkv, b_qkv, *, row_tile):
    rows, e_in = x2d.shape
    n3e = w_qkv.shape[1]
    grid = (rows // row_tile,)

    block_bytes = 4 * (2 * row_tile * e_in          # x (double-buffered)
                       + e_in * n3e + n3e           # W, b (single-buffered)
                       + 2 * row_tile * n3e)        # out (double-buffered)

    return pl.pallas_call(
        _qkv_proj_kernel,
        out_shape=jax.ShapeDtypeStruct((rows, n3e), x2d.dtype),
        grid_spec=pltpu.PrefetchScalarGridSpec(
            num_scalar_prefetch=0,
            grid=grid,
            in_specs=[
                pl.BlockSpec((row_tile, e_in), lambda i: (i, 0)),
                pl.BlockSpec((e_in, n3e), lambda i: (0, 0),
                             pipeline_mode=pl.Buffered(1)),
                pl.BlockSpec((1, n3e), lambda i: (0, 0),
                             pipeline_mode=pl.Buffered(1)),
            ],
            out_specs=pl.BlockSpec((row_tile, n3e), lambda i: (i, 0)),
        ),
        compiler_params=pltpu.CompilerParams(
            dimension_semantics=("parallel",),
            vmem_limit_bytes=_clamp_vmem_limit(block_bytes)),
    )(x2d, w_qkv, b_qkv)


# --------------------------------------------------------------------------
# Kernel 2: flash attention + per-head output-projection accumulation
#   grid = (B, n_q_tiles, H, n_kv_tiles)   (kv last, arbitrary)
# --------------------------------------------------------------------------
def _flash_attn_outproj_kernel(q_ref, k_ref, v_ref, wo_ref, bo_ref, o_ref,
                               m_sc, l_sc, acc_sc, oacc_sc,
                               *, scale, causal, q_tile, kv_tile, approx_recip):
    qi = pl.program_id(1)
    h = pl.program_id(2)
    ki = pl.program_id(3)
    n_h = pl.num_programs(2)
    n_k = pl.num_programs(3)

    @pl.when(ki == 0)
    def _init_head():
        m_sc[...] = jnp.full_like(m_sc, -jnp.inf)
        l_sc[...] = jnp.zeros_like(l_sc)
        acc_sc[...] = jnp.zeros_like(acc_sc)

    @pl.when(jnp.logical_and(h == 0, ki == 0))
    def _init_out():
        oacc_sc[...] = jnp.zeros_like(oacc_sc)

    def _attend_block():
        q = q_ref[0, 0]                                   # (tq, D) compute dtype
        kk = k_ref[0, 0]                                  # (tk, D)
        s = jnp.dot(q, kk.T, preferred_element_type=jnp.float32) * scale
        if causal:
            row = qi * q_tile + lax.broadcasted_iota(jnp.int32, s.shape, 0)
            col = ki * kv_tile + lax.broadcasted_iota(jnp.int32, s.shape, 1)
            s = jnp.where(col <= row, s, -1e30)
        m_prev = m_sc[...]
        m_new = jnp.maximum(m_prev, jnp.max(s, axis=-1, keepdims=True))
        alpha = jnp.exp(m_prev - m_new)
        p = jnp.exp(s - m_new)                            # (tq, tk) f32
        l_sc[...] = alpha * l_sc[...] + jnp.sum(p, axis=-1, keepdims=True)
        acc_sc[...] = alpha * acc_sc[...] + jnp.dot(
            p.astype(v_ref.dtype), v_ref[0, 0], preferred_element_type=jnp.float32)
        m_sc[...] = m_new

    if causal:
        # Skip kv tiles that lie entirely above the diagonal.
        @pl.when(ki * kv_tile <= qi * q_tile + (q_tile - 1))
        def _():
            _attend_block()
    else:
        _attend_block()

    @pl.when(ki == n_k - 1)
    def _finish_head():
        inv_l = pl.reciprocal(l_sc[...], approx=approx_recip)   # (tq, 1)
        o_h = acc_sc[...] * inv_l                               # (tq, D) f32
        # Per-head output projection accumulation: out += o_h @ Wo[h]
        oacc_sc[...] += jnp.dot(o_h.astype(wo_ref.dtype), wo_ref[0],
                                preferred_element_type=jnp.float32)

    @pl.when(jnp.logical_and(h == n_h - 1, ki == n_k - 1))
    def _write_out():
        o_ref[0] = (oacc_sc[...] + bo_ref[...]).astype(o_ref.dtype)


def _flash_attention_outproj(q, k, v, wo_r, bo, *, causal, scale,
                             q_tile, kv_tile, out_dtype, approx_recip):
    B, H, S, D = q.shape
    E = wo_r.shape[-1]
    n_q = S // q_tile
    n_k = S // kv_tile
    grid = (B, n_q, H, n_k)

    kernel = functools.partial(
        _flash_attn_outproj_kernel, scale=scale, causal=causal,
        q_tile=q_tile, kv_tile=kv_tile, approx_recip=approx_recip)

    qkv_item = jnp.dtype(q.dtype).itemsize
    out_item = jnp.dtype(out_dtype).itemsize
    block_bytes = (
        2 * (q_tile * D + 2 * kv_tile * D + D * E) * qkv_item   # q,k,v,Wo (2 bufs)
        + E * 4                                                 # bo (1 buf)
        + 2 * q_tile * E * out_item                             # out block
        + (2 * q_tile + q_tile * D + q_tile * E) * 4)           # scratch

    return pl.pallas_call(
        kernel,
        out_shape=jax.ShapeDtypeStruct((B, S, E), out_dtype),
        grid_spec=pltpu.PrefetchScalarGridSpec(
            num_scalar_prefetch=0,
            grid=grid,
            in_specs=[
                pl.BlockSpec((1, 1, q_tile, D), lambda b, qi, h, ki: (b, h, qi, 0)),
                pl.BlockSpec((1, 1, kv_tile, D), lambda b, qi, h, ki: (b, h, ki, 0)),
                pl.BlockSpec((1, 1, kv_tile, D), lambda b, qi, h, ki: (b, h, ki, 0)),
                pl.BlockSpec((1, D, E), lambda b, qi, h, ki: (h, 0, 0)),
                pl.BlockSpec((1, E), lambda b, qi, h, ki: (0, 0),
                             pipeline_mode=pl.Buffered(1)),
            ],
            out_specs=pl.BlockSpec((1, q_tile, E), lambda b, qi, h, ki: (b, qi, 0)),
            scratch_shapes=[
                pltpu.VMEM((q_tile, 1), jnp.float32),   # running max m
                pltpu.VMEM((q_tile, 1), jnp.float32),   # running sum l
                pltpu.VMEM((q_tile, D), jnp.float32),   # attention accumulator
                pltpu.VMEM((q_tile, E), jnp.float32),   # output-proj accumulator
            ],
        ),
        compiler_params=pltpu.CompilerParams(
            dimension_semantics=("parallel", "parallel", "arbitrary", "arbitrary"),
            vmem_limit_bytes=_clamp_vmem_limit(block_bytes)),
    )(q, k, v, wo_r, bo)


# --------------------------------------------------------------------------
# public wrapper
# --------------------------------------------------------------------------
def multihead_self_attention(x, params, *, num_heads, causal=False,
                             use_bf16_mxu=True, q_tile_cap=128, kv_tile_cap=256):
    B, S, E = x.shape
    assert E % num_heads == 0, "embedding_dim must be divisible by num_heads"
    D = E // num_heads
    wq, bq, wk, bk, wv, bv, wo, bo = params

    # --- fused QKV projection -------------------------------------------
    w_qkv = jnp.concatenate([wq, wk, wv], axis=1)          # (E, 3E)
    b_qkv = jnp.concatenate([bq, bk, bv], axis=1)          # (1, 3E)
    rows = B * S
    row_tile = _largest_divisor_tile(rows, 256)
    qkv = _qkv_projection(x.reshape(rows, E), w_qkv, b_qkv, row_tile=row_tile)

    # Head-major layout so the attention kernel never slices the lane dim.
    qkv = qkv.reshape(B, S, 3, num_heads, D).transpose(2, 0, 3, 1, 4)  # (3,B,H,S,D)
    compute_dtype = jnp.bfloat16 if use_bf16_mxu else x.dtype
    q = qkv[0].astype(compute_dtype)
    k = qkv[1].astype(compute_dtype)
    v = qkv[2].astype(compute_dtype)

    # Output projection reshaped per head (accumulated inside the kernel).
    wo_r = wo.reshape(num_heads, D, E).astype(compute_dtype)

    q_tile = _largest_divisor_tile(S, q_tile_cap)
    kv_tile = _largest_divisor_tile(S, kv_tile_cap)

    return _flash_attention_outproj(
        q, k, v, wo_r, bo,
        causal=causal, scale=1.0 / math.sqrt(D),
        q_tile=q_tile, kv_tile=kv_tile,
        out_dtype=x.dtype, approx_recip=use_bf16_mxu)


# --------------------------------------------------------------------------
# params + pure-JAX reference
# --------------------------------------------------------------------------
def init_params(key, embedding_dim, cond_dim=None):
    """Deterministic PyTorch-Linear-style init; weights stored as (in, out)."""
    if cond_dim is None:
        cond_dim = embedding_dim
    keys = jax.random.split(key, 8)

    def linear(kw, kb, in_dim, out_dim):
        bound = 1.0 / math.sqrt(in_dim)
        w = jax.random.uniform(kw, (in_dim, out_dim), jnp.float32, -bound, bound)
        b = jax.random.uniform(kb, (1, out_dim), jnp.float32, -bound, bound)
        return w, b

    wq, bq = linear(keys[0], keys[1], embedding_dim, embedding_dim)
    wk, bk = linear(keys[2], keys[3], cond_dim, embedding_dim)
    wv, bv = linear(keys[4], keys[5], cond_dim, embedding_dim)
    wo, bo = linear(keys[6], keys[7], embedding_dim, embedding_dim)
    return (wq, bq, wk, bk, wv, bv, wo, bo)


def reference_mhsa(x, params, *, num_heads, causal=False):
    """Pure-JAX reference mirroring the PyTorch forward (dropout=0)."""
    wq, bq, wk, bk, wv, bv, wo, bo = params
    B, S, E = x.shape
    D = E // num_heads
    q = x @ wq + bq
    k = x @ wk + bk
    v = x @ wv + bv
    q = q.reshape(B, S, num_heads, D).transpose(0, 2, 1, 3)
    k = k.reshape(B, S, num_heads, D).transpose(0, 2, 1, 3)
    v = v.reshape(B, S, num_heads, D).transpose(0, 2, 1, 3)
    s = jnp.einsum("bhqd,bhkd->bhqk", q, k) / math.sqrt(D)
    if causal:
        row = lax.broadcasted_iota(jnp.int32, (S, S), 0)
        col = lax.broadcasted_iota(jnp.int32, (S, S), 1)
        s = jnp.where(col <= row, s, -1e30)
    p = jax.nn.softmax(s, axis=-1)
    o = jnp.einsum("bhqk,bhkd->bhqd", p, v)
    o = o.transpose(0, 2, 1, 3).reshape(B, S, E)
    return o @ wo + bo


if __name__ == "__main__":
    num_heads = 4
    embedding_dim = 32
    batch, seq = 2, 8

    key = jax.random.PRNGKey(0)
    kx, kp = jax.random.split(key)
    x = jax.random.normal(kx, (batch, seq, embedding_dim), jnp.float32)
    params = init_params(kp, embedding_dim)

    ref = reference_mhsa(x, params, num_heads=num_heads, causal=False)
    ref_causal = reference_mhsa(x, params, num_heads=num_heads, causal=True)

    # 1) strict f32-operand path
    out_f32 = multihead_self_attention(x, params, num_heads=num_heads,
                                       causal=False, use_bf16_mxu=False)
    out_f32 = jax.block_until_ready(out_f32)
    assert out_f32.shape == (batch, seq, embedding_dim)
    assert jnp.allclose(out_f32, ref, atol=1e-4, rtol=1e-4), "f32 mismatch"

    # 2) causal path (in-tile masking + kv-tile skipping), f32 operands
    out_causal = multihead_self_attention(x, params, num_heads=num_heads,
                                          causal=True, use_bf16_mxu=False)
    out_causal = jax.block_until_ready(out_causal)
    assert jnp.allclose(out_causal, ref_causal, atol=1e-4, rtol=1e-4), \
        "causal mismatch"

    # 3) bf16 MXU-operand path (perf mode; softmax stats stay f32)
    out_bf16 = multihead_self_attention(x, params, num_heads=num_heads,
                                        causal=False, use_bf16_mxu=True)
    out_bf16 = jax.block_until_ready(out_bf16)
    assert jnp.allclose(out_bf16, ref, atol=5e-2, rtol=5e-2), "bf16 mismatch"

    print("KERNEL_OK")
</pallas_src>

<mosaic_0001>
module attributes {stable_mosaic.version = 11 : i64} {
  func.func @_qkv_proj_kernel(%arg0: i32, %arg1: memref<16x32xf32, #tpu.memory_space<vmem>>, %arg2: memref<32x96xf32, #tpu.memory_space<vmem>>, %arg3: memref<1x96xf32, #tpu.memory_space<vmem>>, %arg4: memref<16x96xf32, #tpu.memory_space<vmem>>) attributes {dimension_semantics = [#tpu.dimension_semantics<parallel>], iteration_bounds = array<i64: 1>, scalar_prefetch = 0 : i64, scratch_operands = 0 : i64, tpu.core_type = #tpu.core_type<tc>, window_params = [{transform_indices = @transform_0, window_bounds = array<i64: 16, 32>}, {pipeline_mode = #tpu.pipeline_mode<synchronous>, transform_indices = @transform_1, window_bounds = array<i64: 32, 96>}, {pipeline_mode = #tpu.pipeline_mode<synchronous>, transform_indices = @transform_2, window_bounds = array<i64: 1, 96>}, {transform_indices = @transform_3, window_bounds = array<i64: 16, 96>}]} {
    %c0 = arith.constant 0 : index
    %c0_0 = arith.constant 0 : index
    %0 = vector.load %arg1[%c0, %c0_0] : memref<16x32xf32, #tpu.memory_space<vmem>>, vector<16x32xf32>
    %c0_1 = arith.constant 0 : index
    %c0_2 = arith.constant 0 : index
    %1 = vector.load %arg2[%c0_1, %c0_2] : memref<32x96xf32, #tpu.memory_space<vmem>>, vector<32x96xf32>
    %cst = arith.constant dense<0.000000e+00> : vector<16x96xf32>
    %2 = tpu.matmul %0, %1, %cst {dimension_numbers = #tpu.dot_dimension_numbers<[1], [0], [0], [1], [0, 0, 1, 1], [], []>} : vector<16x32xf32>, vector<32x96xf32>, vector<16x96xf32> -> vector<16x96xf32>
    %c0_3 = arith.constant 0 : index
    %c0_4 = arith.constant 0 : index
    %3 = vector.load %arg3[%c0_3, %c0_4] : memref<1x96xf32, #tpu.memory_space<vmem>>, vector<1x96xf32>
    %4 = vector.broadcast %3 : vector<1x96xf32> to vector<16x96xf32>
    %5 = arith.addf %2, %4 : vector<16x96xf32>
    %c0_5 = arith.constant 0 : index
    %c0_6 = arith.constant 0 : index
    %6 = vector.load %arg4[%c0_5, %c0_6] : memref<16x96xf32, #tpu.memory_space<vmem>>, vector<16x96xf32>
    tpu.vector_store %arg4[%c0_5, %c0_6], %5 {strides = array<i32>} : memref<16x96xf32, #tpu.memory_space<vmem>>, vector<16x96xf32>,
    return
  }
  func.func @transform_0(%arg0: i32) -> (i32, i32) {
    %c0_i32 = arith.constant 0 : i32
    %c0_i32_0 = arith.constant 0 : i32
    return %arg0, %c0_i32 : i32, i32
  }
  func.func @transform_1(%arg0: i32) -> (i32, i32) {
    %c0_i32 = arith.constant 0 : i32
    %c0_i32_0 = arith.constant 0 : i32
    %c0_i32_1 = arith.constant 0 : i32
    return %c0_i32, %c0_i32_0 : i32, i32
  }
  func.func @transform_2(%arg0: i32) -> (i32, i32) {
    %c0_i32 = arith.constant 0 : i32
    %c0_i32_0 = arith.constant 0 : i32
    %c0_i32_1 = arith.constant 0 : i32
    return %c0_i32, %c0_i32_0 : i32, i32
  }
  func.func @transform_3(%arg0: i32) -> (i32, i32) {
    %c0_i32 = arith.constant 0 : i32
    %c0_i32_0 = arith.constant 0 : i32
    return %arg0, %c0_i32 : i32, i32
  }
}

</mosaic_0001>

<llo_original>
// kernel: tpu_custom_call.1
$region0: #{tpu_custom_call.1}
  #allocation0 [shape = 'u32[]', space=smem, size = 0x4, offset = 0x4, fixed_abs, tag = 'smem constant byte address 0x4 - core index']
  #allocation1 [shape = 'u32[144,128]{1,0:T(1,128)}', space=vmem, size = 0x12000, scoped, tag = 'internal scratch']
  %s0 = inlined_call_operand.hbm [shape: f32[16,32], index: 0, kind: input, shape index: {}]
  %s1 = inlined_call_operand.hbm [shape: f32[32,96], index: 1, kind: input, shape index: {}]
  %s2 = inlined_call_operand.vmem [shape: f32[1,96], index: 2, kind: input, shape index: {}]
  %s3 = inlined_call_operand.hbm [shape: f32[16,96], index: 3, kind: output, shape index: {}]
  %s4 = sld [smem:[#allocation0]]
  $region30: #{tpu_custom_call.1} parent=0
    _
  %s6 = ssub.s32 1, %s4
  %s7 = scalar_select 0, %s6, %s4
  $region1: #{tpu_custom_call.1} parent=0
    #allocation2 [shape = 'u8[8192]{0}', space=vmem, size = 0x2000, scoped, tag = 'input window, operand 0, single buffered']
    #allocation3 [shape = 's32[1]{0}', space=sflag, size = 0x4, scoped, tag = 'scoped memory for tpu_custom_call.1']
    #allocation4 [shape = 's32[1]{0}', space=sflag, size = 0x4, scoped, tag = 'scoped memory for tpu_custom_call.1']
    #allocation5 [shape = 'u8[16384]{0}', space=vmem, size = 0x4000, scoped, tag = 'input window, operand 1, single buffered']
    #allocation6 [shape = 's32[1]{0}', space=sflag, size = 0x4, scoped, tag = 'scoped memory for tpu_custom_call.1']
    #allocation7 [shape = 'u8[8192]{0}', space=vmem, size = 0x2000, scoped, tag = 'output window, operand 0, single buffered']
    %8 = vsyncpa [#allocation3], 0
    %9 = vsyncpa [#allocation6], 0
    %10 = vsyncpa [#allocation4], 0
    // Predicated region
    $region2: #{tpu_custom_call.1} parent=1 // pred_check
      _
    $region3: #{tpu_custom_call.1} parent=1 // pred_check_branch
      %12 = sbr.rel (0) target = $region5
    $region4: #{tpu_custom_call.1} parent=1 // pred_region
      %s14 = ssub.s32 256, 256
      %15 = vsyncadd [#allocation3], %s14
      %s16 = sshll.u32 [#allocation2], 4
      %s17 = int_to_ptr.vmem [resolvable:$true] %s16
      %22 = dma.hbm_to_vmem [thread:$0]  %s0, 256, %s17, [#allocation3], 128, 128, 8
    $region5: #{tpu_custom_call.1} parent=1 // pred_fallthru
      _
    // Predicated region
    $region6: #{tpu_custom_call.1} parent=1 // pred_check
      _
    $region7: #{tpu_custom_call.1} parent=1 // pred_check_branch
      %24 = sbr.rel (0) target = $region9
    $region8: #{tpu_custom_call.1} parent=1 // pred_region
      %s26 = ssub.s32 512, 512
      %27 = vsyncadd [#allocation6], %s26
      %s28 = sshll.u32 [#allocation5], 4
      %s29 = int_to_ptr.vmem [resolvable:$true] %s28
      %34 = dma.hbm_to_vmem [thread:$0]  %s1, 512, %s29, [#allocation6], 128, 128, 8
    $region9: #{tpu_custom_call.1} parent=1 // pred_fallthru
      _
    // Predicated region
    $region10: #{tpu_custom_call.1} parent=1 // pred_check
      _
    $region11: #{tpu_custom_call.1} parent=1 // pred_check_branch
      %36 = sbr.rel (0) target = $region13
    $region12: #{tpu_custom_call.1} parent=1 // pred_region
      _
    $region13: #{tpu_custom_call.1} parent=1 // pred_fallthru
      _
    // Predicated region
    $region14: #{tpu_custom_call.1} parent=1 // pred_check
      _
    $region15: #{tpu_custom_call.1} parent=1 // pred_check_branch
      %38 = sbr.rel (0) target = $region17
    $region16: #{tpu_custom_call.1} parent=1 // pred_region
      %39 = dma.done [#allocation3], 256
    $region17: #{tpu_custom_call.1} parent=1 // pred_fallthru
      _
    // Predicated region
    $region18: #{tpu_custom_call.1} parent=1 // pred_check
      _
    $region19: #{tpu_custom_call.1} parent=1 // pred_check_branch
      %41 = sbr.rel (0) target = $region21
    $region20: #{tpu_custom_call.1} parent=1 // pred_region
      %42 = dma.done [#allocation6], 512
    $region21: #{tpu_custom_call.1} parent=1 // pred_fallthru
      _
    %v43 = vld [vmem:[#allocation2] sm:$0xff]
    %v44 = vld [vmem:[#allocation2 + $0x8] sm:$0xff]
    %v45 = vld [vmem:[#allocation5] sm:$0xff]
    %v46 = vld [vmem:[#allocation5 + $0x8] sm:$0xff]
    %v47 = vld [vmem:[#allocation5 + $0x10] sm:$0xff]
    %v48 = vld [vmem:[#allocation5 + $0x18] sm:$0xff]
    %v49 = vld [vmem:[%s2] sm:$0x1]
    %v51 = vlaneseq
    %v52 = vshrl.u32 %v51, 7
    %v53 = vsub.s32 0, %v52
    %v54 = vrot.slane %v49, %v53
    %vm56 = vcmask 261120
    %v58 = vsel %vm56, %v43, 0
    %v61 = vsel %vm56, %v44, 0
    %63 = vmatprep.subr.mxu0 0.0
    %64 = vmatpush1.msra.mxu0 %v45
    %65 = vmatprep.subr.mxu0 0.0
    %66 = vmatpush1.msra.mxu0 %v46
    %67 = vmatprep.subr.mxu0 0.0
    %68 = vmatpush1.msra.mxu0 %v47
    %69 = vmatprep.subr.mxu0 0.0
    %70 = vmatpush1.msra.mxu0 %v48
    %71 = vmatprep.subr.mxu0 0.0
    %72 = vmatpush1.msra.mxu0 0.0
    %73 = vmatprep.subr.mxu0 0.0
    %74 = vmatpush1.msra.mxu0 0.0
    %75 = vmatprep.subr.mxu0 0.0
    %76 = vmatpush1.msra.mxu0 0.0
    %77 = vmatprep.subr.mxu0 0.0
    %78 = vmatpush1.msra.mxu0 0.0
    %79 = vmatprep.subr.mxu0 0.0
    %80 = vmatpush1.msra.mxu0 0.0
    %81 = vmatprep.subr.mxu0 0.0
    %82 = vmatpush1.msra.mxu0 0.0
    %83 = vmatprep.subr.mxu0 0.0
    %84 = vmatpush1.msra.mxu0 0.0
    %85 = vmatprep.subr.mxu0 0.0
    %86 = vmatpush1.msra.mxu0 0.0
    %87 = vmatprep.subr.mxu0 0.0
    %88 = vmatpush1.msra.mxu0 0.0
    %89 = vmatprep.subr.mxu0 0.0
    %90 = vmatpush1.msra.mxu0 0.0
    %91 = vmatprep.subr.mxu0 0.0
    %92 = vmatpush1.msra.mxu0 0.0
    %93 = vmatprep.subr.mxu0 0.0
    %94 = vmatpush1.msra.mxu0 0.0
    %95 = vmatprep.subr.mxu0 0.0
    %96 = vmatpush1.msra.mxu0 0.0
    %97 = vmatprep.subr.mxu0 0.0
    %98 = vmatpush1.msra.mxu0 0.0
    %99 = vmatprep.subr.mxu0 0.0
    %100 = vmatpush1.msra.mxu0 0.0
    %101 = vmatprep.subr.mxu0 0.0
    %102 = vmatpush1.msra.mxu0 0.0
    %103 = vmatprep.subr.mxu0 0.0
    %104 = vmatpush1.msra.mxu0 0.0
    %105 = vmatprep.subr.mxu0 0.0
    %106 = vmatpush1.msra.mxu0 0.0
    %107 = vmatprep.subr.mxu0 0.0
    %108 = vmatpush1.msra.mxu0 0.0
    %109 = vmatprep.subr.mxu0 0.0
    %110 = vmatpush1.msra.mxu0 0.0
    %111 = vmatprep.subr.mxu0 0.0
    %112 = vmatpush1.msra.mxu0 0.0
    %113 = vmatprep.subr.mxu0 0.0
    %114 = vmatpush1.msra.mxu0 0.0
    %115 = vmatprep.subr.mxu0 0.0
    %116 = vmatpush1.msra.mxu0 0.0
    %117 = vmatprep.subr.mxu0 0.0
    %118 = vmatpush1.msra.mxu0 0.0
    %119 = vmatprep.subr.mxu0 0.0
    %120 = vmatpush1.msra.mxu0 0.0
    %121 = vmatprep.subr.mxu0 0.0
    %122 = vmatpush1.msra.mxu0 0.0
    %123 = vmatprep.subr.mxu0 0.0
    %124 = vmatpush1.msra.mxu0 0.0
    %125 = vmatprep.subr.mxu0 0.0
    %126 = vmatpush1.msra.mxu0 0.0
    %127 = vmatprep.mubr.f32.mxu0 0.0
    %128 = vmatmul.mubr.f32.gmra.mrb[0].mxu0 %v58
    %v129 = vpop.f32.mrb[0].mxu0
    %v130 = vadd.f32 %v54, %v129
    %v131 = vpop.f32.mrb[0].mxu0
    %132 = vmatprep.mubr.f32.mxu0 0.0
    %133 = vmatmul.mubr.f32.gmra.mrb[0].mxu0 %v61
    %v134 = vpop.f32.mrb[0].mxu0
    %v135 = vadd.f32 %v54, %v134
    %v136 = vpop.f32.mrb[0].mxu0
    %137 = vdwg.mxu0
    %vm138 = vcmask 785408
    %139 = vst.msk [vmem:[#allocation7] sm:$0xff] %vm138, %v130
    %140 = vst.msk [vmem:[#allocation7 + $0x8] sm:$0xff] %vm138, %v135
    // Predicated region
    $region22: #{tpu_custom_call.1} parent=1 // pred_check
      _
    $region23: #{tpu_custom_call.1} parent=1 // pred_check_branch
      %142 = sbr.rel (0) target = $region25
    $region24: #{tpu_custom_call.1} parent=1 // pred_region
      %s144 = ssub.s32 256, 256
      %145 = vsyncadd [#allocation4], %s144
      %s146 = sshll.u32 [#allocation7], 4
      %s147 = int_to_ptr.vmem [resolvable:$true] %s146
      %152 = dma.vmem_to_hbm [thread:$0]  %s147, 256, %s3, [#allocation4], 128, 128, 8
    $region25: #{tpu_custom_call.1} parent=1 // pred_fallthru
      _
    // Predicated region
    $region26: #{tpu_custom_call.1} parent=1 // pred_check
      _
    $region27: #{tpu_custom_call.1} parent=1 // pred_check_branch
      %154 = sbr.rel (0) target = $region29
    $region28: #{tpu_custom_call.1} parent=1 // pred_region
      %155 = dma.done [#allocation4], 256
    $region29: #{tpu_custom_call.1} parent=1 // pred_fallthru
      _
    %156 = vsyncpa [#allocation3], 1
    %157 = vsyncpa [#allocation6], 1
    %158 = vsyncpa [#allocation4], 1

</llo_original>
